<compile_context>
chip_gen: v7x
topology: tpu7x:2x2x1
jax: 0.10.0
libtpu: 0.0.40
codegen_flags: <defaults>
</compile_context>

<pallas_src>
import functools

import jax
import jax.numpy as jnp
from jax.experimental import pallas as pl
from jax.experimental.pallas import tpu as pltpu


# ------------------------------------------------------------------ helpers --
def _round_up(x, m):
    return (x + m - 1) // m * m


# ------------------------------------------------------------------- kernel --
def _rgcn2_kernel(a_ref, bases0_ref, comp0_ref, bias0_ref,
                  bases1c_ref, comp1_ref, bias1_ref, o_ref, *,
                  num_relations, num_bases, o_pad, relu0):
    """Fused 2-layer relational graph convolution (basis-restructured).

    a_ref       : (R, n_p, n_p)       f32   padded per-relation adjacency
    bases0_ref  : (B, n_p, h_pad)     bf16  layer-0 bases (indim == num_nodes)
    comp0_ref   : (R*B,)              f32   SMEM scalars, index r*B + b
    bias0_ref   : (1, h_pad)          f32
    bases1c_ref : (h_pad, B*o_pad)    bf16  layer-1 bases concatenated on out dim
    comp1_ref   : (R*B,)              f32   SMEM scalars
    bias1_ref   : (1, o_pad)          f32
    o_ref       : (n_p, o_pad)        f32
    """
    R, B = num_relations, num_bases

    def combined_adjacency(comp_ref, b):
        # sum_r comp[r, b] * A_r : f32 VPU combine, one bf16 rounding at the end.
        # a_ref is re-read per use (no whole-A hoist -> low vreg pressure).
        a_cmb = comp_ref[0 * B + b] * a_ref[0]
        for r in range(1, R):
            a_cmb = a_cmb + comp_ref[r * B + b] * a_ref[r]
        return a_cmb.astype(jnp.bfloat16)

    # ---- layer 0: featureless (X == I)  =>  X @ bases0[b] == bases0[b].
    #      out0 = sum_b (sum_r comp0[r,b] A_r) @ bases0[b] + bias0
    acc0 = jnp.dot(combined_adjacency(comp0_ref, 0), bases0_ref[0],
                   preferred_element_type=jnp.float32)
    for b in range(1, B):
        acc0 = acc0 + jnp.dot(combined_adjacency(comp0_ref, b), bases0_ref[b],
                              preferred_element_type=jnp.float32)
    x1 = acc0 + bias0_ref[...]
    if relu0:
        x1 = jnp.maximum(x1, 0.0)
    x1 = x1.astype(jnp.bfloat16)                      # (n_p, h_pad)

    # ---- layer 1: one wide per-basis projection (B*o_pad lanes fill the MXU),
    #      then B adjacency matmuls accumulated in f32.
    xb_all = jnp.dot(x1, bases1c_ref[...],
                     preferred_element_type=jnp.float32).astype(jnp.bfloat16)

    acc1 = jnp.dot(combined_adjacency(comp1_ref, 0), xb_all[:, 0:o_pad],
                   preferred_element_type=jnp.float32)
    for b in range(1, B):
        acc1 = acc1 + jnp.dot(combined_adjacency(comp1_ref, b),
                              xb_all[:, b * o_pad:(b + 1) * o_pad],
                              preferred_element_type=jnp.float32)

    # Final layer: no activation. Padded rows hold bias values (sliced off outside).
    o_ref[...] = acc1 + bias1_ref[...]


# ------------------------------------------------- once-per-graph preparation
def prepare_adjacency(A, *, num_nodes, num_relations):
    """Pad / relayout the dense relation-stacked adjacency once per graph."""
    N, R = num_nodes, num_relations
    n_p = _round_up(N, 16)                               # sublane-only padding
    A3 = A.reshape(N, R, N).transpose(1, 0, 2)           # (R, N, N)
    A_pad = jnp.zeros((R, n_p, n_p), jnp.float32).at[:, :N, :N].set(A3)
    return A_pad


def prepare_params(params, *, num_nodes, num_relations, num_bases):
    """Pad / cast / concatenate the basis-decomposed parameters once."""
    p0, p1 = params
    N, R, Bb = num_nodes, num_relations, num_bases
    hidden = p0["bases"].shape[2]
    out_dim = p1["bases"].shape[2]

    # The featureless (X == I) shortcut for layer 0 requires indim == num_nodes.
    assert p0["bases"].shape[1] == N, "layer 0 must be featureless (indim == num_nodes)"

    n_p = _round_up(N, 16)          # rows: sublane alignment only
    h_pad = _round_up(hidden, 128)  # lane dims: 128 for dense stores / free slicing
    o_pad = _round_up(out_dim, 128)

    bases0_p = (jnp.zeros((Bb, n_p, h_pad), jnp.float32)
                .at[:, :N, :hidden].set(p0["bases"]).astype(jnp.bfloat16))

    bases1_pad = (jnp.zeros((Bb, h_pad, o_pad), jnp.float32)
                  .at[:, :hidden, :out_dim].set(p1["bases"]))
    # Concatenate along the output dim: slice b is lane block [b*o_pad:(b+1)*o_pad].
    bases1c_p = (bases1_pad.transpose(1, 0, 2)
                 .reshape(h_pad, Bb * o_pad).astype(jnp.bfloat16))

    bias0_p = jnp.zeros((1, h_pad), jnp.float32).at[:, :hidden].set(p0["bias"])
    bias1_p = jnp.zeros((1, o_pad), jnp.float32).at[:, :out_dim].set(p1["bias"])

    return dict(
        bases0=bases0_p, comp0=p0["comp"].reshape(-1), bias0=bias0_p,
        bases1c=bases1c_p, comp1=p1["comp"].reshape(-1), bias1=bias1_p,
        relu0=bool(p0["relu"]), n_p=n_p, h_pad=h_pad, o_pad=o_pad,
        out_dim=out_dim,
    )


# ----------------------------------------------------------------- forward ---
def rgcn2_forward(A_pad, prep, *, num_relations, num_bases):
    """Fused 2-layer RGCN forward via a single pallas_call."""
    R, Bb = num_relations, num_bases
    n_p, o_pad = prep["n_p"], prep["o_pad"]

    kernel = functools.partial(
        _rgcn2_kernel, num_relations=R, num_bases=Bb,
        o_pad=o_pad, relu0=prep["relu0"])

    # Resident-set estimate for the scoped VMEM limit (headroom for temporaries).
    resident = (A_pad.size * 4
                + prep["bases0"].size * 2 + prep["bases1c"].size * 2
                + (prep["bias0"].size + prep["bias1"].size) * 4
                + n_p * o_pad * 4)
    vmem_limit = int(min(max(2 * resident + (4 << 20), 16 << 20), 100 << 20))

    out_pad = pl.pallas_call(
        kernel,
        out_shape=jax.ShapeDtypeStruct((n_p, o_pad), jnp.float32),
        in_specs=[
            pl.BlockSpec(memory_space=pltpu.MemorySpace.VMEM),   # A        (f32)
            pl.BlockSpec(memory_space=pltpu.MemorySpace.VMEM),   # bases0   (bf16)
            pl.BlockSpec(memory_space=pltpu.MemorySpace.SMEM),   # comp0    (1D scalars)
            pl.BlockSpec(memory_space=pltpu.MemorySpace.VMEM),   # bias0    (f32)
            pl.BlockSpec(memory_space=pltpu.MemorySpace.VMEM),   # bases1c  (bf16)
            pl.BlockSpec(memory_space=pltpu.MemorySpace.SMEM),   # comp1    (1D scalars)
            pl.BlockSpec(memory_space=pltpu.MemorySpace.VMEM),   # bias1    (f32)
        ],
        out_specs=pl.BlockSpec(memory_space=pltpu.MemorySpace.VMEM),
        compiler_params=pltpu.CompilerParams(vmem_limit_bytes=vmem_limit),
    )(A_pad, prep["bases0"], prep["comp0"], prep["bias0"],
      prep["bases1c"], prep["comp1"], prep["bias1"])

    return out_pad


# ------------------------------------------------------------- param setup ---
def xavier_uniform(key, shape, fan_in, fan_out):
    limit = jnp.sqrt(6.0 / (fan_in + fan_out))
    return jax.random.uniform(key, shape, jnp.float32, -limit, limit)


def init_rgcn_params(key, modules, num_relations, num_bases, bias):
    """Basis-decomposed parameters mirroring GraphConvolution.__init__ shapes."""
    params = []
    for indim, outdim, _ltype, act in modules:
        key, kb, kc, kbias = jax.random.split(key, 4)
        bases = xavier_uniform(kb, (num_bases, indim, outdim), indim, outdim)
        comp = xavier_uniform(kc, (num_relations, num_bases),
                              num_relations, num_bases)
        b = (xavier_uniform(kbias, (1, outdim), 1, outdim)
             if bias else jnp.zeros((1, outdim), jnp.float32))
        params.append(dict(bases=bases, comp=comp, bias=b, relu=(act == "relu")))
    return params


# ---------------------------------------------------------- f32 reference ---
def rgcn_reference(A, params, num_nodes, num_relations):
    """Plain-JAX f32 reference of the original torch forward (p_dropout == 0)."""
    X = jnp.eye(num_nodes, dtype=jnp.float32)            # featureless layer 0
    A3 = A.reshape(num_nodes, num_relations, num_nodes)
    for p in params:
        W = jnp.einsum("rb,bio->rio", p["comp"], p["bases"])     # (R, in, out)
        XW = jnp.einsum("ni,rio->rno", X, W)                     # (R, N, out)
        out = jnp.einsum("nrm,rmo->no", A3, XW) + p["bias"]
        X = jnp.maximum(out, 0.0) if p["relu"] else out
    return X


# --------------------------------------------------------------------- main --
if __name__ == "__main__":
    num_nodes = 16
    num_relations = 3
    num_bases = 2
    hidden = 32
    out_dim = 8

    # modules = [(indim, outdim, layer_type, activation), ...]
    modules = [
        (num_nodes, hidden, "gc", "relu"),   # input layer, featureless
        (hidden, out_dim, "gc", None),       # output layer
    ]

    key = jax.random.PRNGKey(0)
    key, ka = jax.random.split(key)

    # Dense relation-stacked adjacency (N, R*N), row-normalized per relation.
    A_raw = (jax.random.uniform(ka, (num_nodes, num_relations * num_nodes)) > 0.7)
    A = A_raw.astype(jnp.float32)
    A = A.reshape(num_nodes, num_relations, num_nodes)
    deg = jnp.clip(A.sum(axis=-1, keepdims=True), 1.0, None)
    A = (A / deg).reshape(num_nodes, num_relations * num_nodes)

    params = init_rgcn_params(key, modules, num_relations, num_bases, bias=True)

    # Once-per-graph / once-per-parameter-set preparation (outside per-call path).
    A_pad = prepare_adjacency(A, num_nodes=num_nodes, num_relations=num_relations)
    prep = prepare_params(params, num_nodes=num_nodes,
                          num_relations=num_relations, num_bases=num_bases)

    out_pad = rgcn2_forward(A_pad, prep, num_relations=num_relations,
                            num_bases=num_bases)
    out_pad = jax.block_until_ready(out_pad)
    out = out_pad[:num_nodes, :out_dim]

    assert out.shape == (num_nodes, out_dim), out.shape
    assert out.dtype == jnp.float32
    assert bool(jnp.all(jnp.isfinite(out)))

    # Loose tolerance: kernel uses bf16 MXU inputs with f32 accumulation.
    ref = rgcn_reference(A, params, num_nodes, num_relations)
    assert bool(jnp.allclose(out, ref, rtol=5e-2, atol=5e-2)), \
        float(jnp.max(jnp.abs(out - ref)))

    print("KERNEL_OK")
</pallas_src>

<mosaic_0001>
module attributes {stable_mosaic.version = 11 : i64} {
  func.func @_rgcn2_kernel(%arg0: memref<3x16x16xf32, #tpu.memory_space<vmem>>, %arg1: memref<2x16x128xbf16, #tpu.memory_space<vmem>>, %arg2: memref<6xf32, #tpu.memory_space<smem>>, %arg3: memref<1x128xf32, #tpu.memory_space<vmem>>, %arg4: memref<128x256xbf16, #tpu.memory_space<vmem>>, %arg5: memref<6xf32, #tpu.memory_space<smem>>, %arg6: memref<1x128xf32, #tpu.memory_space<vmem>>, %arg7: memref<16x128xf32, #tpu.memory_space<vmem>>) attributes {dimension_semantics = [], scalar_prefetch = 0 : i64, scratch_operands = 0 : i64, tpu.core_type = #tpu.core_type<tc>} {
    %c0 = arith.constant 0 : index
    %0 = memref.load %arg2[%c0] : memref<6xf32, #tpu.memory_space<smem>>
    %c0_0 = arith.constant 0 : index
    %c0_1 = arith.constant 0 : index
    %c0_2 = arith.constant 0 : index
    %1 = vector.load %arg0[%c0_0, %c0_1, %c0_2] : memref<3x16x16xf32, #tpu.memory_space<vmem>>, vector<1x16x16xf32>
    %2 = vector.shape_cast %1 : vector<1x16x16xf32> to vector<16x16xf32>
    %3 = vector.broadcast %0 : f32 to vector<16x16xf32>
    %4 = arith.mulf %3, %2 : vector<16x16xf32>
    %c2 = arith.constant 2 : index
    %5 = memref.load %arg2[%c2] : memref<6xf32, #tpu.memory_space<smem>>
    %c1 = arith.constant 1 : index
    %c0_3 = arith.constant 0 : index
    %c0_4 = arith.constant 0 : index
    %6 = vector.load %arg0[%c1, %c0_3, %c0_4] : memref<3x16x16xf32, #tpu.memory_space<vmem>>, vector<1x16x16xf32>
    %7 = vector.shape_cast %6 : vector<1x16x16xf32> to vector<16x16xf32>
    %8 = vector.broadcast %5 : f32 to vector<16x16xf32>
    %9 = arith.mulf %8, %7 : vector<16x16xf32>
    %10 = arith.addf %4, %9 : vector<16x16xf32>
    %c4 = arith.constant 4 : index
    %11 = memref.load %arg2[%c4] : memref<6xf32, #tpu.memory_space<smem>>
    %c2_5 = arith.constant 2 : index
    %c0_6 = arith.constant 0 : index
    %c0_7 = arith.constant 0 : index
    %12 = vector.load %arg0[%c2_5, %c0_6, %c0_7] : memref<3x16x16xf32, #tpu.memory_space<vmem>>, vector<1x16x16xf32>
    %13 = vector.shape_cast %12 : vector<1x16x16xf32> to vector<16x16xf32>
    %14 = vector.broadcast %11 : f32 to vector<16x16xf32>
    %15 = arith.mulf %14, %13 : vector<16x16xf32>
    %16 = arith.addf %10, %15 : vector<16x16xf32>
    %17 = arith.truncf %16 : vector<16x16xf32> to vector<16x16xbf16>
    %c0_8 = arith.constant 0 : index
    %c0_9 = arith.constant 0 : index
    %c0_10 = arith.constant 0 : index
    %18 = vector.load %arg1[%c0_8, %c0_9, %c0_10] : memref<2x16x128xbf16, #tpu.memory_space<vmem>>, vector<1x16x128xbf16>
    %19 = vector.shape_cast %18 : vector<1x16x128xbf16> to vector<16x128xbf16>
    %cst = arith.constant dense<0.000000e+00> : vector<16x128xf32>
    %20 = tpu.matmul %17, %19, %cst {dimension_numbers = #tpu.dot_dimension_numbers<[1], [0], [0], [1], [0, 0, 1, 1], [], []>} : vector<16x16xbf16>, vector<16x128xbf16>, vector<16x128xf32> -> vector<16x128xf32>
    %c1_11 = arith.constant 1 : index
    %21 = memref.load %arg2[%c1_11] : memref<6xf32, #tpu.memory_space<smem>>
    %c0_12 = arith.constant 0 : index
    %c0_13 = arith.constant 0 : index
    %c0_14 = arith.constant 0 : index
    %22 = vector.load %arg0[%c0_12, %c0_13, %c0_14] : memref<3x16x16xf32, #tpu.memory_space<vmem>>, vector<1x16x16xf32>
    %23 = vector.shape_cast %22 : vector<1x16x16xf32> to vector<16x16xf32>
    %24 = vector.broadcast %21 : f32 to vector<16x16xf32>
    %25 = arith.mulf %24, %23 : vector<16x16xf32>
    %c3 = arith.constant 3 : index
    %26 = memref.load %arg2[%c3] : memref<6xf32, #tpu.memory_space<smem>>
    %c1_15 = arith.constant 1 : index
    %c0_16 = arith.constant 0 : index
    %c0_17 = arith.constant 0 : index
    %27 = vector.load %arg0[%c1_15, %c0_16, %c0_17] : memref<3x16x16xf32, #tpu.memory_space<vmem>>, vector<1x16x16xf32>
    %28 = vector.shape_cast %27 : vector<1x16x16xf32> to vector<16x16xf32>
    %29 = vector.broadcast %26 : f32 to vector<16x16xf32>
    %30 = arith.mulf %29, %28 : vector<16x16xf32>
    %31 = arith.addf %25, %30 : vector<16x16xf32>
    %c5 = arith.constant 5 : index
    %32 = memref.load %arg2[%c5] : memref<6xf32, #tpu.memory_space<smem>>
    %c2_18 = arith.constant 2 : index
    %c0_19 = arith.constant 0 : index
    %c0_20 = arith.constant 0 : index
    %33 = vector.load %arg0[%c2_18, %c0_19, %c0_20] : memref<3x16x16xf32, #tpu.memory_space<vmem>>, vector<1x16x16xf32>
    %34 = vector.shape_cast %33 : vector<1x16x16xf32> to vector<16x16xf32>
    %35 = vector.broadcast %32 : f32 to vector<16x16xf32>
    %36 = arith.mulf %35, %34 : vector<16x16xf32>
    %37 = arith.addf %31, %36 : vector<16x16xf32>
    %38 = arith.truncf %37 : vector<16x16xf32> to vector<16x16xbf16>
    %c1_21 = arith.constant 1 : index
    %c0_22 = arith.constant 0 : index
    %c0_23 = arith.constant 0 : index
    %39 = vector.load %arg1[%c1_21, %c0_22, %c0_23] : memref<2x16x128xbf16, #tpu.memory_space<vmem>>, vector<1x16x128xbf16>
    %40 = vector.shape_cast %39 : vector<1x16x128xbf16> to vector<16x128xbf16>
    %cst_24 = arith.constant dense<0.000000e+00> : vector<16x128xf32>
    %41 = tpu.matmul %38, %40, %cst_24 {dimension_numbers = #tpu.dot_dimension_numbers<[1], [0], [0], [1], [0, 0, 1, 1], [], []>} : vector<16x16xbf16>, vector<16x128xbf16>, vector<16x128xf32> -> vector<16x128xf32>
    %42 = arith.addf %20, %41 : vector<16x128xf32>
    %c0_25 = arith.constant 0 : index
    %c0_26 = arith.constant 0 : index
    %43 = vector.load %arg3[%c0_25, %c0_26] : memref<1x128xf32, #tpu.memory_space<vmem>>, vector<1x128xf32>
    %44 = vector.broadcast %43 : vector<1x128xf32> to vector<16x128xf32>
    %45 = arith.addf %42, %44 : vector<16x128xf32>
    %cst_27 = arith.constant 0.000000e+00 : f32
    %46 = vector.broadcast %cst_27 : f32 to vector<16x128xf32>
    %47 = arith.maximumf %45, %46 : vector<16x128xf32>
    %48 = arith.truncf %47 : vector<16x128xf32> to vector<16x128xbf16>
    %c0_28 = arith.constant 0 : index
    %c0_29 = arith.constant 0 : index
    %49 = vector.load %arg4[%c0_28, %c0_29] : memref<128x256xbf16, #tpu.memory_space<vmem>>, vector<128x256xbf16>
    %cst_30 = arith.constant dense<0.000000e+00> : vector<16x256xf32>
    %50 = tpu.matmul %48, %49, %cst_30 {dimension_numbers = #tpu.dot_dimension_numbers<[1], [0], [0], [1], [0, 0, 1, 1], [], []>} : vector<16x128xbf16>, vector<128x256xbf16>, vector<16x256xf32> -> vector<16x256xf32>
    %51 = arith.truncf %50 : vector<16x256xf32> to vector<16x256xbf16>
    %c0_31 = arith.constant 0 : index
    %52 = memref.load %arg5[%c0_31] : memref<6xf32, #tpu.memory_space<smem>>
    %c0_32 = arith.constant 0 : index
    %c0_33 = arith.constant 0 : index
    %c0_34 = arith.constant 0 : index
    %53 = vector.load %arg0[%c0_32, %c0_33, %c0_34] : memref<3x16x16xf32, #tpu.memory_space<vmem>>, vector<1x16x16xf32>
    %54 = vector.shape_cast %53 : vector<1x16x16xf32> to vector<16x16xf32>
    %55 = vector.broadcast %52 : f32 to vector<16x16xf32>
    %56 = arith.mulf %55, %54 : vector<16x16xf32>
    %c2_35 = arith.constant 2 : index
    %57 = memref.load %arg5[%c2_35] : memref<6xf32, #tpu.memory_space<smem>>
    %c1_36 = arith.constant 1 : index
    %c0_37 = arith.constant 0 : index
    %c0_38 = arith.constant 0 : index
    %58 = vector.load %arg0[%c1_36, %c0_37, %c0_38] : memref<3x16x16xf32, #tpu.memory_space<vmem>>, vector<1x16x16xf32>
    %59 = vector.shape_cast %58 : vector<1x16x16xf32> to vector<16x16xf32>
    %60 = vector.broadcast %57 : f32 to vector<16x16xf32>
    %61 = arith.mulf %60, %59 : vector<16x16xf32>
    %62 = arith.addf %56, %61 : vector<16x16xf32>
    %c4_39 = arith.constant 4 : index
    %63 = memref.load %arg5[%c4_39] : memref<6xf32, #tpu.memory_space<smem>>
    %c2_40 = arith.constant 2 : index
    %c0_41 = arith.constant 0 : index
    %c0_42 = arith.constant 0 : index
    %64 = vector.load %arg0[%c2_40, %c0_41, %c0_42] : memref<3x16x16xf32, #tpu.memory_space<vmem>>, vector<1x16x16xf32>
    %65 = vector.shape_cast %64 : vector<1x16x16xf32> to vector<16x16xf32>
    %66 = vector.broadcast %63 : f32 to vector<16x16xf32>
    %67 = arith.mulf %66, %65 : vector<16x16xf32>
    %68 = arith.addf %62, %67 : vector<16x16xf32>
    %69 = arith.truncf %68 : vector<16x16xf32> to vector<16x16xbf16>
    %70 = vector.extract_strided_slice %51 {offsets = [0, 0], sizes = [16, 128], strides = [1, 1]} : vector<16x256xbf16> to vector<16x128xbf16>
    %cst_43 = arith.constant dense<0.000000e+00> : vector<16x128xf32>
    %71 = tpu.matmul %69, %70, %cst_43 {dimension_numbers = #tpu.dot_dimension_numbers<[1], [0], [0], [1], [0, 0, 1, 1], [], []>} : vector<16x16xbf16>, vector<16x128xbf16>, vector<16x128xf32> -> vector<16x128xf32>
    %c1_44 = arith.constant 1 : index
    %72 = memref.load %arg5[%c1_44] : memref<6xf32, #tpu.memory_space<smem>>
    %c0_45 = arith.constant 0 : index
    %c0_46 = arith.constant 0 : index
    %c0_47 = arith.constant 0 : index
    %73 = vector.load %arg0[%c0_45, %c0_46, %c0_47] : memref<3x16x16xf32, #tpu.memory_space<vmem>>, vector<1x16x16xf32>
    %74 = vector.shape_cast %73 : vector<1x16x16xf32> to vector<16x16xf32>
    %75 = vector.broadcast %72 : f32 to vector<16x16xf32>
    %76 = arith.mulf %75, %74 : vector<16x16xf32>
    %c3_48 = arith.constant 3 : index
    %77 = memref.load %arg5[%c3_48] : memref<6xf32, #tpu.memory_space<smem>>
    %c1_49 = arith.constant 1 : index
    %c0_50 = arith.constant 0 : index
    %c0_51 = arith.constant 0 : index
    %78 = vector.load %arg0[%c1_49, %c0_50, %c0_51] : memref<3x16x16xf32, #tpu.memory_space<vmem>>, vector<1x16x16xf32>
    %79 = vector.shape_cast %78 : vector<1x16x16xf32> to vector<16x16xf32>
    %80 = vector.broadcast %77 : f32 to vector<16x16xf32>
    %81 = arith.mulf %80, %79 : vector<16x16xf32>
    %82 = arith.addf %76, %81 : vector<16x16xf32>
    %c5_52 = arith.constant 5 : index
    %83 = memref.load %arg5[%c5_52] : memref<6xf32, #tpu.memory_space<smem>>
    %c2_53 = arith.constant 2 : index
    %c0_54 = arith.constant 0 : index
    %c0_55 = arith.constant 0 : index
    %84 = vector.load %arg0[%c2_53, %c0_54, %c0_55] : memref<3x16x16xf32, #tpu.memory_space<vmem>>, vector<1x16x16xf32>
    %85 = vector.shape_cast %84 : vector<1x16x16xf32> to vector<16x16xf32>
    %86 = vector.broadcast %83 : f32 to vector<16x16xf32>
    %87 = arith.mulf %86, %85 : vector<16x16xf32>
    %88 = arith.addf %82, %87 : vector<16x16xf32>
    %89 = arith.truncf %88 : vector<16x16xf32> to vector<16x16xbf16>
    %90 = vector.extract_strided_slice %51 {offsets = [0, 128], sizes = [16, 128], strides = [1, 1]} : vector<16x256xbf16> to vector<16x128xbf16>
    %cst_56 = arith.constant dense<0.000000e+00> : vector<16x128xf32>
    %91 = tpu.matmul %89, %90, %cst_56 {dimension_numbers = #tpu.dot_dimension_numbers<[1], [0], [0], [1], [0, 0, 1, 1], [], []>} : vector<16x16xbf16>, vector<16x128xbf16>, vector<16x128xf32> -> vector<16x128xf32>
    %92 = arith.addf %71, %91 : vector<16x128xf32>
    %c0_57 = arith.constant 0 : index
    %c0_58 = arith.constant 0 : index
    %93 = vector.load %arg6[%c0_57, %c0_58] : memref<1x128xf32, #tpu.memory_space<vmem>>, vector<1x128xf32>
    %94 = vector.broadcast %93 : vector<1x128xf32> to vector<16x128xf32>
    %95 = arith.addf %92, %94 : vector<16x128xf32>
    %c0_59 = arith.constant 0 : index
    %c0_60 = arith.constant 0 : index
    %96 = vector.load %arg7[%c0_59, %c0_60] : memref<16x128xf32, #tpu.memory_space<vmem>>, vector<16x128xf32>
    tpu.vector_store %arg7[%c0_59, %c0_60], %95 {strides = array<i32>} : memref<16x128xf32, #tpu.memory_space<vmem>>, vector<16x128xf32>,
    return
  }
}

</mosaic_0001>

<llo_original>
// kernel: tpu_custom_call.1
$region0: #{tpu_custom_call.1}
  #allocation0 [shape = 'u32[]', space=smem, size = 0x4, offset = 0x4, fixed_abs, tag = 'smem constant byte address 0x4 - core index']
  #allocation1 [shape = 'u32[144,128]{1,0:T(1,128)}', space=vmem, size = 0x12000, scoped, tag = 'internal scratch']
  %s0 = inlined_call_operand.hbm [shape: f32[3,16,16], index: 0, kind: input, shape index: {}]
  %s1 = inlined_call_operand.hbm [shape: bf16[2,16,128], index: 1, kind: input, shape index: {}]
  %s2 = inlined_call_operand.vmem [shape: f32[6], index: 2, kind: input, shape index: {}]
  %s3 = inlined_call_operand.vmem [shape: f32[1,128], index: 3, kind: input, shape index: {}]
  %s4 = inlined_call_operand.hbm [shape: bf16[128,256], index: 4, kind: input, shape index: {}]
  %s5 = inlined_call_operand.vmem [shape: f32[6], index: 5, kind: input, shape index: {}]
  %s6 = inlined_call_operand.vmem [shape: f32[1,128], index: 6, kind: input, shape index: {}]
  %s7 = inlined_call_operand.hbm [shape: f32[16,128], index: 7, kind: output, shape index: {}]
  %s8 = sld [smem:[#allocation0]]
  $region58: #{tpu_custom_call.1} parent=0
    _
  %s10 = ssub.s32 1, %s8
  %s11 = scalar_select 0, %s10, %s8
  $region1: #{tpu_custom_call.1} parent=0
    #allocation2 [shape = 'u8[24576]{0}', space=vmem, size = 0x6000, scoped, tag = 'input window, operand 0, single buffered']
    #allocation3 [shape = 's32[1]{0}', space=sflag, size = 0x4, scoped, tag = 'scoped memory for tpu_custom_call.1']
    #allocation4 [shape = 's32[1]{0}', space=sflag, size = 0x4, scoped, tag = 'scoped memory for tpu_custom_call.1']
    #allocation5 [shape = 's32[1]{0}', space=sflag, size = 0x4, scoped, tag = 'scoped memory for tpu_custom_call.1']
    #allocation6 [shape = 'u8[8192]{0}', space=vmem, size = 0x2000, scoped, tag = 'input window, operand 1, single buffered']
    #allocation7 [shape = 's32[1]{0}', space=sflag, size = 0x4, scoped, tag = 'scoped memory for tpu_custom_call.1']
    #allocation8 [shape = 'u8[512]{0}', space=smem, size = 0x200, scoped, tag = 'input window, operand 2, single buffered']
    #allocation9 [shape = 'u8[65536]{0}', space=vmem, size = 0x10000, scoped, tag = 'input window, operand 4, single buffered']
    #allocation10 [shape = 'u8[512]{0}', space=smem, size = 0x200, scoped, tag = 'input window, operand 5, single buffered']
    #allocation11 [shape = 's32[1]{0}', space=sflag, size = 0x4, scoped, tag = 'scoped memory for tpu_custom_call.1']
    #allocation12 [shape = 'u8[8192]{0}', space=vmem, size = 0x2000, scoped, tag = 'output window, operand 0, single buffered']
    %12 = vsyncpa [#allocation3], 0
    %13 = vsyncpa [#allocation7], 0
    %14 = vsyncpa [#allocation5], 0
    %15 = vsyncpa [#allocation11], 0
    %16 = vsyncpa [#allocation4], 0
    // Predicated region
    $region2: #{tpu_custom_call.1} parent=1 // pred_check
      _
    $region3: #{tpu_custom_call.1} parent=1 // pred_check_branch
      %18 = sbr.rel (0) target = $region5
    $region4: #{tpu_custom_call.1} parent=1 // pred_region
      %s20 = ssub.s32 768, 768
      %21 = vsyncadd [#allocation3], %s20
      %s22 = sshll.u32 [#allocation2], 4
      %s23 = int_to_ptr.vmem [resolvable:$true] %s22
      %28 = dma.hbm_to_vmem [thread:$0]  %s0, 768, %s23, [#allocation3], 128, 128, 8
    $region5: #{tpu_custom_call.1} parent=1 // pred_fallthru
      _
    // Predicated region
    $region6: #{tpu_custom_call.1} parent=1 // pred_check
      _
    $region7: #{tpu_custom_call.1} parent=1 // pred_check_branch
      %30 = sbr.rel (0) target = $region9
    $region8: #{tpu_custom_call.1} parent=1 // pred_region
      %s32 = ssub.s32 256, 256
      %33 = vsyncadd [#allocation7], %s32
      %s34 = sshll.u32 [#allocation6], 4
      %s35 = int_to_ptr.vmem [resolvable:$true] %s34
      %40 = dma.hbm_to_vmem [thread:$0]  %s1, 256, %s35, [#allocation7], 64, 64, 4
    $region9: #{tpu_custom_call.1} parent=1 // pred_fallthru
      _
    // Predicated region
    $region10: #{tpu_custom_call.1} parent=1 // pred_check
      _
    $region11: #{tpu_custom_call.1} parent=1 // pred_check_branch
      %42 = sbr.rel (0) target = $region13
    $region12: #{tpu_custom_call.1} parent=1 // pred_region
      %s44 = ssub.s32 16, 16
      %45 = vsyncadd [#allocation5], %s44
      %s47 = sshll.u32 %s2, 4
      %s48 = int_to_ptr.vmem [resolvable:$true] %s47
      %50 = dma.vmem_to_smem %s48, 16, [#allocation8], [#allocation5]
    $region13: #{tpu_custom_call.1} parent=1 // pred_fallthru
      _
    // Predicated region
    $region14: #{tpu_custom_call.1} parent=1 // pred_check
      _
    $region15: #{tpu_custom_call.1} parent=1 // pred_check_branch
      %52 = sbr.rel (0) target = $region17
    $region16: #{tpu_custom_call.1} parent=1 // pred_region
      _
    $region17: #{tpu_custom_call.1} parent=1 // pred_fallthru
      _
    // Predicated region
    $region18: #{tpu_custom_call.1} parent=1 // pred_check
      _
    $region19: #{tpu_custom_call.1} parent=1 // pred_check_branch
      %54 = sbr.rel (0) target = $region21
    $region20: #{tpu_custom_call.1} parent=1 // pred_region
      %s56 = ssub.s32 2048, 2048
      %57 = vsyncadd [#allocation7], %s56
      %s58 = sshll.u32 [#allocation9], 4
      %s59 = int_to_ptr.vmem [resolvable:$true] %s58
      %64 = dma.hbm_to_vmem [thread:$0]  %s4, 2048, %s59, [#allocation7], 128, 128, 8
    $region21: #{tpu_custom_call.1} parent=1 // pred_fallthru
      _
    // Predicated region
    $region22: #{tpu_custom_call.1} parent=1 // pred_check
      _
    $region23: #{tpu_custom_call.1} parent=1 // pred_check_branch
      %66 = sbr.rel (0) target = $region25
    $region24: #{tpu_custom_call.1} parent=1 // pred_region
      %s68 = ssub.s32 16, 16
      %69 = vsyncadd [#allocation11], %s68
      %s71 = sshll.u32 %s5, 4
      %s72 = int_to_ptr.vmem [resolvable:$true] %s71
      %74 = dma.vmem_to_smem %s72, 16, [#allocation10], [#allocation11]
    $region25: #{tpu_custom_call.1} parent=1 // pred_fallthru
      _
    // Predicated region
    $region26: #{tpu_custom_call.1} parent=1 // pred_check
      _
    $region27: #{tpu_custom_call.1} parent=1 // pred_check_branch
      %76 = sbr.rel (0) target = $region29
    $region28: #{tpu_custom_call.1} parent=1 // pred_region
      _
    $region29: #{tpu_custom_call.1} parent=1 // pred_fallthru
      _
    // Predicated region
    $region30: #{tpu_custom_call.1} parent=1 // pred_check
      _
    $region31: #{tpu_custom_call.1} parent=1 // pred_check_branch
      %78 = sbr.rel (0) target = $region33
    $region32: #{tpu_custom_call.1} parent=1 // pred_region
      %79 = dma.done [#allocation3], 768
    $region33: #{tpu_custom_call.1} parent=1 // pred_fallthru
      _
    // Predicated region
    $region34: #{tpu_custom_call.1} parent=1 // pred_check
      _
    $region35: #{tpu_custom_call.1} parent=1 // pred_check_branch
      %81 = sbr.rel (0) target = $region37
    $region36: #{tpu_custom_call.1} parent=1 // pred_region
      %82 = dma.done [#allocation7], 256
    $region37: #{tpu_custom_call.1} parent=1 // pred_fallthru
      _
    // Predicated region
    $region38: #{tpu_custom_call.1} parent=1 // pred_check
      _
    $region39: #{tpu_custom_call.1} parent=1 // pred_check_branch
      %84 = sbr.rel (0) target = $region41
    $region40: #{tpu_custom_call.1} parent=1 // pred_region
      %85 = dma.done [#allocation5], 16
    $region41: #{tpu_custom_call.1} parent=1 // pred_fallthru
      _
    // Predicated region
    $region42: #{tpu_custom_call.1} parent=1 // pred_check
      _
    $region43: #{tpu_custom_call.1} parent=1 // pred_check_branch
      %87 = sbr.rel (0) target = $region45
    $region44: #{tpu_custom_call.1} parent=1 // pred_region
      %88 = dma.done [#allocation7], 2048
    $region45: #{tpu_custom_call.1} parent=1 // pred_fallthru
      _
    // Predicated region
    $region46: #{tpu_custom_call.1} parent=1 // pred_check
      _
    $region47: #{tpu_custom_call.1} parent=1 // pred_check_branch
      %90 = sbr.rel (0) target = $region49
    $region48: #{tpu_custom_call.1} parent=1 // pred_region
      %91 = dma.done [#allocation11], 16
    $region49: #{tpu_custom_call.1} parent=1 // pred_fallthru
      _
    %92 = sfence
    %s94 = sld [smem:[#allocation8]]
    %v95 = vld [vmem:[#allocation2] sm:$0xff]
    %v96 = vld [vmem:[#allocation2 + $0x8] sm:$0xff]
    %v97 = vstv %s94
    %v98 = vmul.f32 %v97, %v95
    %v99 = vmul.f32 %v97, %v96
    %s100 = sld [smem:[#allocation8 + $0x2]]
    %s101 = scalar_lea.vmem [#allocation2], 16
    %v102 = vld [vmem:[%s101] sm:$0xff]
    %v103 = vld [vmem:[%s101 + $0x8] sm:$0xff]
    %v104 = vstv %s100
    %v105 = vmul.f32 %v104, %v102
    %v106 = vmul.f32 %v104, %v103
    %v107 = vadd.f32 %v98, %v105
    %v108 = vadd.f32 %v99, %v106
    %s109 = sld [smem:[#allocation8 + $0x4]]
    %s110 = scalar_lea.vmem [#allocation2], 32
    %v111 = vld [vmem:[%s110] sm:$0xff]
    %v112 = vld [vmem:[%s110 + $0x8] sm:$0xff]
    %v113 = vstv %s109
    %v114 = vmul.f32 %v113, %v111
    %v115 = vmul.f32 %v113, %v112
    %v116 = vadd.f32 %v107, %v114
    %v117 = vadd.f32 %v108, %v115
    %v118 = vpack.c.bf16 %v117, %v116
    %v119 = vld [vmem:[#allocation6] sm:$0xf]
    %v120 = vld [vmem:[#allocation6 + $0x4] sm:$0xf]
    %s121 = sld [smem:[#allocation8 + $0x1]]
    %v122 = vstv %s121
    %v123 = vmul.f32 %v122, %v95
    %v124 = vmul.f32 %v122, %v96
    %s125 = sld [smem:[#allocation8 + $0x3]]
    %v126 = vstv %s125
    %v127 = vmul.f32 %v126, %v102
    %v128 = vmul.f32 %v126, %v103
    %v129 = vadd.f32 %v123, %v127
    %v130 = vadd.f32 %v124, %v128
    %s131 = sld [smem:[#allocation8 + $0x5]]
    %v132 = vstv %s131
    %v133 = vmul.f32 %v132, %v111
    %v134 = vmul.f32 %v132, %v112
    %v135 = vadd.f32 %v129, %v133
    %v136 = vadd.f32 %v130, %v134
    %v137 = vpack.c.bf16 %v136, %v135
    %s138 = scalar_lea.vmem [#allocation6], 8
    %v139 = vld [vmem:[%s138] sm:$0xf]
    %v140 = vld [vmem:[%s138 + $0x4] sm:$0xf]
    %v143 = vunpack.c.l.b16 %v139
    %v144 = vunpack.c.l.b16 %v140
    %v145 = vpack.c.b16 %v144, %v143
    %vm147 = vcmask 130048
    %v149 = vsel %vm147, %v137, 0
    %151 = vmatprep.subr.bf16.mxu0 0
    %152 = vmatpush1.bf16.msra.mxu0 %v145
    %153 = vmatprep.subr.bf16.mxu0 0
    %154 = vmatpush1.bf16.msra.mxu0 0
    %155 = vmatprep.subr.bf16.mxu0 0
    %156 = vmatpush1.bf16.msra.mxu0 0
    %157 = vmatprep.subr.bf16.mxu0 0
    %158 = vmatpush1.bf16.msra.mxu0 0
    %159 = vmatprep.subr.bf16.mxu0 0
    %160 = vmatpush1.bf16.msra.mxu0 0
    %161 = vmatprep.subr.bf16.mxu0 0
    %162 = vmatpush1.bf16.msra.mxu0 0
    %163 = vmatprep.subr.bf16.mxu0 0
    %164 = vmatpush1.bf16.msra.mxu0 0
    %165 = vmatprep.subr.bf16.mxu0 0
    %166 = vmatpush1.bf16.msra.mxu0 0
    %167 = vmatprep.subr.bf16.mxu0 0
    %168 = vmatpush1.bf16.msra.mxu0 0
    %169 = vmatprep.subr.bf16.mxu0 0
    %170 = vmatpush1.bf16.msra.mxu0 0
    %171 = vmatprep.subr.bf16.mxu0 0
    %172 = vmatpush1.bf16.msra.mxu0 0
    %173 = vmatprep.subr.bf16.mxu0 0
    %174 = vmatpush1.bf16.msra.mxu0 0
    %175 = vmatprep.subr.bf16.mxu0 0
    %176 = vmatpush1.bf16.msra.mxu0 0
    %177 = vmatprep.subr.bf16.mxu0 0
    %178 = vmatpush1.bf16.msra.mxu0 0
    %179 = vmatprep.subr.bf16.mxu0 0
    %180 = vmatpush1.bf16.msra.mxu0 0
    %181 = vmatprep.subr.bf16.mxu0 0
    %182 = vmatpush1.bf16.msra.mxu0 0
    %183 = vmatprep.mubr.bf16.mxu0 0
    %184 = vmatmul.mubr.bf16.gmra.mrb[0].mxu0 %v149
    %v185 = vpop.f32.mrb[0].mxu0
    %v186 = vadd.f32 0.0, %v185
    %v187 = vpop.f32.mrb[0].mxu0
    %v188 = vpop.f32.mrb[0].mxu0
    %v189 = vadd.f32 0.0, %v188
    %v190 = vpop.f32.mrb[0].mxu0
    %191 = vdwg.mxu0
    %v194 = vunpack.c.l.b16 %v119
    %v195 = vunpack.c.l.b16 %v120
    %v196 = vpack.c.b16 %v195, %v194
    %v199 = vsel %vm147, %v118, 0
    %201 = vmatprep.subr.bf16.mxu0 0
    %202 = vmatpush1.bf16.msra.mxu0 %v196
    %203 = vmatprep.subr.bf16.mxu0 0
    %204 = vmatpush1.bf16.msra.mxu0 0
    %205 = vmatprep.subr.bf16.mxu0 0
    %206 = vmatpush1.bf16.msra.mxu0 0
    %207 = vmatprep.subr.bf16.mxu0 0
    %208 = vmatpush1.bf16.msra.mxu0 0
    %209 = vmatprep.subr.bf16.mxu0 0
    %210 = vmatpush1.bf16.msra.mxu0 0
    %211 = vmatprep.subr.bf16.mxu0 0
    %212 = vmatpush1.bf16.msra.mxu0 0
    %213 = vmatprep.subr.bf16.mxu0 0
    %214 = vmatpush1.bf16.msra.mxu0 0
    %215 = vmatprep.subr.bf16.mxu0 0
    %216 = vmatpush1.bf16.msra.mxu0 0
    %217 = vmatprep.subr.bf16.mxu0 0
    %218 = vmatpush1.bf16.msra.mxu0 0
    %219 = vmatprep.subr.bf16.mxu0 0
    %220 = vmatpush1.bf16.msra.mxu0 0
    %221 = vmatprep.subr.bf16.mxu0 0
    %222 = vmatpush1.bf16.msra.mxu0 0
    %223 = vmatprep.subr.bf16.mxu0 0
    %224 = vmatpush1.bf16.msra.mxu0 0
    %225 = vmatprep.subr.bf16.mxu0 0
    %226 = vmatpush1.bf16.msra.mxu0 0
    %227 = vmatprep.subr.bf16.mxu0 0
    %228 = vmatpush1.bf16.msra.mxu0 0
    %229 = vmatprep.subr.bf16.mxu0 0
    %230 = vmatpush1.bf16.msra.mxu0 0
    %231 = vmatprep.subr.bf16.mxu0 0
    %232 = vmatpush1.bf16.msra.mxu0 0
    %233 = vmatprep.mubr.bf16.mxu0 0
    %234 = vmatmul.mubr.bf16.gmra.mrb[0].mxu0 %v199
    %v235 = vpop.f32.mrb[0].mxu0
    %v236 = vadd.f32 %v186, %v235
    %v237 = vpop.f32.mrb[0].mxu0
    %v238 = vpop.f32.mrb[0].mxu0
    %v239 = vadd.f32 %v189, %v238
    %v240 = vpop.f32.mrb[0].mxu0
    %241 = vdwg.mxu0
    %v242 = vld [vmem:[%s3] sm:$0x1]
    %v244 = vlaneseq
    %v245 = vshrl.u32 %v244, 7
    %v246 = vsub.s32 0, %v245
    %v247 = vrot.slane %v242, %v246
    %v249 = vadd.f32 %v236, %v247
    %v250 = vadd.f32 %v239, %v247
    %v251 = vmax.f32 %v249, 0.0
    %v252 = vmax.f32 %v250, 0.0
    %v253 = vpack.c.bf16 %v252, %v251
    %v254 = vld [vmem:[#allocation9] sm:$0xff]
    %v255 = vld [vmem:[#allocation9 + $0x8] sm:$0xff]
    %v256 = vld [vmem:[#allocation9 + $0x10] sm:$0xff]
    %v257 = vld [vmem:[#allocation9 + $0x18] sm:$0xff]
    %v258 = vld [vmem:[#allocation9 + $0x20] sm:$0xff]
    %v259 = vld [vmem:[#allocation9 + $0x28] sm:$0xff]
    %v260 = vld [vmem:[#allocation9 + $0x30] sm:$0xff]
    %v261 = vld [vmem:[#allocation9 + $0x38] sm:$0xff]
    %v262 = vld [vmem:[#allocation9 + $0x40] sm:$0xff]
    %v263 = vld [vmem:[#allocation9 + $0x48] sm:$0xff]
    %v264 = vld [vmem:[#allocation9 + $0x50] sm:$0xff]
    %v265 = vld [vmem:[#allocation9 + $0x58] sm:$0xff]
    %v266 = vld [vmem:[#allocation9 + $0x60] sm:$0xff]
    %v267 = vld [vmem:[#allocation9 + $0x68] sm:$0xff]
    %v268 = vld [vmem:[#allocation9 + $0x70] sm:$0xff]
    %v269 = vld [vmem:[#allocation9 + $0x78] sm:$0xff]
    %v286 = vunpack.c.l.b16 %v254
    %v287 = vunpack.c.h.b16 %v254
    %v288 = vunpack.c.l.b16 %v255
    %v289 = vunpack.c.h.b16 %v255
    %v290 = vunpack.c.l.b16 %v256
    %v291 = vunpack.c.h.b16 %v256
    %v292 = vunpack.c.l.b16 %v257
    %v293 = vunpack.c.h.b16 %v257
    %v294 = vunpack.c.l.b16 %v258
    %v295 = vunpack.c.h.b16 %v258
    %v296 = vunpack.c.l.b16 %v259
    %v297 = vunpack.c.h.b16 %v259
    %v298 = vunpack.c.l.b16 %v260
    %v299 = vunpack.c.h.b16 %v260
    %v300 = vunpack.c.l.b16 %v261
    %v301 = vunpack.c.h.b16 %v261
    %v302 = vunpack.c.l.b16 %v262
    %v303 = vunpack.c.h.b16 %v262
    %v304 = vunpack.c.l.b16 %v263
    %v305 = vunpack.c.h.b16 %v263
    %v306 = vunpack.c.l.b16 %v264
    %v307 = vunpack.c.h.b16 %v264
    %v308 = vunpack.c.l.b16 %v265
    %v309 = vunpack.c.h.b16 %v265
    %v310 = vunpack.c.l.b16 %v266
    %v311 = vunpack.c.h.b16 %v266
    %v312 = vunpack.c.l.b16 %v267
    %v313 = vunpack.c.h.b16 %v267
    %v314 = vunpack.c.l.b16 %v268
    %v315 = vunpack.c.h.b16 %v268
    %v316 = vunpack.c.l.b16 %v269
    %v317 = vunpack.c.h.b16 %v269
    %v318 = vpack.c.b16 %v288, %v286
    %v319 = vpack.c.b16 %v289, %v287
    %v320 = vpack.c.b16 %v292, %v290
    %v321 = vpack.c.b16 %v293, %v291
    %v322 = vpack.c.b16 %v296, %v294
    %v323 = vpack.c.b16 %v297, %v295
    %v324 = vpack.c.b16 %v300, %v298
    %v325 = vpack.c.b16 %v301, %v299
    %v326 = vpack.c.b16 %v304, %v302
    %v327 = vpack.c.b16 %v305, %v303
    %v328 = vpack.c.b16 %v308, %v306
    %v329 = vpack.c.b16 %v309, %v307
    %v330 = vpack.c.b16 %v312, %v310
    %v331 = vpack.c.b16 %v313, %v311
    %v332 = vpack.c.b16 %v316, %v314
    %v333 = vpack.c.b16 %v317, %v315
    %350 = vmatprep.subr.bf16.mxu0 %v319
    %351 = vmatpush1.bf16.msra.mxu0 %v318
    %352 = vmatprep.subr.bf16.mxu0 %v321
    %353 = vmatpush1.bf16.msra.mxu0 %v320
    %354 = vmatprep.subr.bf16.mxu0 %v323
    %355 = vmatpush1.bf16.msra.mxu0 %v322
    %356 = vmatprep.subr.bf16.mxu0 %v325
    %357 = vmatpush1.bf16.msra.mxu0 %v324
    %358 = vmatprep.subr.bf16.mxu0 %v327
    %359 = vmatpush1.bf16.msra.mxu0 %v326
    %360 = vmatprep.subr.bf16.mxu0 %v329
    %361 = vmatpush1.bf16.msra.mxu0 %v328
    %362 = vmatprep.subr.bf16.mxu0 %v331
    %363 = vmatpush1.bf16.msra.mxu0 %v330
    %364 = vmatprep.subr.bf16.mxu0 %v333
    %365 = vmatpush1.bf16.msra.mxu0 %v332
    %366 = vmatprep.subr.bf16.mxu0 0
    %367 = vmatpush1.bf16.msra.mxu0 0
    %368 = vmatprep.subr.bf16.mxu0 0
    %369 = vmatpush1.bf16.msra.mxu0 0
    %370 = vmatprep.subr.bf16.mxu0 0
    %371 = vmatpush1.bf16.msra.mxu0 0
    %372 = vmatprep.subr.bf16.mxu0 0
    %373 = vmatpush1.bf16.msra.mxu0 0
    %374 = vmatprep.subr.bf16.mxu0 0
    %375 = vmatpush1.bf16.msra.mxu0 0
    %376 = vmatprep.subr.bf16.mxu0 0
    %377 = vmatpush1.bf16.msra.mxu0 0
    %378 = vmatprep.subr.bf16.mxu0 0
    %379 = vmatpush1.bf16.msra.mxu0 0
    %380 = vmatprep.subr.bf16.mxu0 0
    %381 = vmatpush1.bf16.msra.mxu0 0
    %382 = vmatprep.mubr.bf16.mxu0 0
    %383 = vmatmul.mubr.bf16.gmra.mrb[0].mxu0 %v253
    %v384 = vpop.f32.mrb[0].mxu0
    %v385 = vadd.f32 0.0, %v384
    %v386 = vpop.f32.mrb[0].mxu0
    %v387 = vadd.f32 0.0, %v386
    %v388 = vpop.f32.mrb[0].mxu0
    %v389 = vadd.f32 0.0, %v388
    %v390 = vpop.f32.mrb[0].mxu0
    %v391 = vadd.f32 0.0, %v390
    %392 = vdwg.mxu0
    %v393 = vpack.c.bf16 %v389, %v385
    %v394 = vpack.c.bf16 %v391, %v387
    %s395 = sld [smem:[#allocation10]]
    %v396 = vstv %s395
    %v397 = vmul.f32 %v396, %v95
    %v398 = vmul.f32 %v396, %v96
    %s399 = sld [smem:[#allocation10 + $0x2]]
    %v400 = vstv %s399
    %v401 = vmul.f32 %v400, %v102
    %v402 = vmul.f32 %v400, %v103
    %v403 = vadd.f32 %v397, %v401
    %v404 = vadd.f32 %v398, %v402
    %s405 = sld [smem:[#allocation10 + $0x4]]
    %v406 = vstv %s405
    %v407 = vmul.f32 %v406, %v111
    %v408 = vmul.f32 %v406, %v112
    %v409 = vadd.f32 %v403, %v407
    %v410 = vadd.f32 %v404, %v408
    %v411 = vpack.c.bf16 %v410, %v409
    %s412 = sld [smem:[#allocation10 + $0x1]]
    %v413 = vstv %s412
    %v414 = vmul.f32 %v413, %v95
    %v415 = vmul.f32 %v413, %v96
    %s416 = sld [smem:[#allocation10 + $0x3]]
    %v417 = vstv %s416
    %v418 = vmul.f32 %v417, %v102
    %v419 = vmul.f32 %v417, %v103
    %v420 = vadd.f32 %v414, %v418
    %v421 = vadd.f32 %v415, %v419
    %s422 = sld [smem:[#allocation10 + $0x5]]
    %v423 = vstv %s422
    %v424 = vmul.f32 %v423, %v111
    %v425 = vmul.f32 %v423, %v112
    %v426 = vadd.f32 %v420, %v424
    %v427 = vadd.f32 %v421, %v425
    %v428 = vpack.c.bf16 %v427, %v426
    %v430 = vsel %vm147, %v428, 0
    %432 = vmatprep.subr.bf16.mxu0 0
    %433 = vmatpush1.bf16.msra.mxu0 %v394
    %434 = vmatprep.subr.bf16.mxu0 0
    %435 = vmatpush1.bf16.msra.mxu0 0
    %436 = vmatprep.subr.bf16.mxu0 0
    %437 = vmatpush1.bf16.msra.mxu0 0
    %438 = vmatprep.subr.bf16.mxu0 0
    %439 = vmatpush1.bf16.msra.mxu0 0
    %440 = vmatprep.subr.bf16.mxu0 0
    %441 = vmatpush1.bf16.msra.mxu0 0
    %442 = vmatprep.subr.bf16.mxu0 0
    %443 = vmatpush1.bf16.msra.mxu0 0
    %444 = vmatprep.subr.bf16.mxu0 0
    %445 = vmatpush1.bf16.msra.mxu0 0
    %446 = vmatprep.subr.bf16.mxu0 0
    %447 = vmatpush1.bf16.msra.mxu0 0
    %448 = vmatprep.subr.bf16.mxu0 0
    %449 = vmatpush1.bf16.msra.mxu0 0
    %450 = vmatprep.subr.bf16.mxu0 0
    %451 = vmatpush1.bf16.msra.mxu0 0
    %452 = vmatprep.subr.bf16.mxu0 0
    %453 = vmatpush1.bf16.msra.mxu0 0
    %454 = vmatprep.subr.bf16.mxu0 0
    %455 = vmatpush1.bf16.msra.mxu0 0
    %456 = vmatprep.subr.bf16.mxu0 0
    %457 = vmatpush1.bf16.msra.mxu0 0
    %458 = vmatprep.subr.bf16.mxu0 0
    %459 = vmatpush1.bf16.msra.mxu0 0
    %460 = vmatprep.subr.bf16.mxu0 0
    %461 = vmatpush1.bf16.msra.mxu0 0
    %462 = vmatprep.subr.bf16.mxu0 0
    %463 = vmatpush1.bf16.msra.mxu0 0
    %464 = vmatprep.mubr.bf16.mxu0 0
    %465 = vmatmul.mubr.bf16.gmra.mrb[0].mxu0 %v430
    %v466 = vpop.f32.mrb[0].mxu0
    %v467 = vadd.f32 0.0, %v466
    %v468 = vpop.f32.mrb[0].mxu0
    %v469 = vpop.f32.mrb[0].mxu0
    %v470 = vadd.f32 0.0, %v469
    %v471 = vpop.f32.mrb[0].mxu0
    %472 = vdwg.mxu0
    %v474 = vsel %vm147, %v411, 0
    %476 = vmatprep.subr.bf16.mxu0 0
    %477 = vmatpush1.bf16.msra.mxu0 %v393
    %478 = vmatprep.subr.bf16.mxu0 0
    %479 = vmatpush1.bf16.msra.mxu0 0
    %480 = vmatprep.subr.bf16.mxu0 0
    %481 = vmatpush1.bf16.msra.mxu0 0
    %482 = vmatprep.subr.bf16.mxu0 0
    %483 = vmatpush1.bf16.msra.mxu0 0
    %484 = vmatprep.subr.bf16.mxu0 0
    %485 = vmatpush1.bf16.msra.mxu0 0
    %486 = vmatprep.subr.bf16.mxu0 0
    %487 = vmatpush1.bf16.msra.mxu0 0
    %488 = vmatprep.subr.bf16.mxu0 0
    %489 = vmatpush1.bf16.msra.mxu0 0
    %490 = vmatprep.subr.bf16.mxu0 0
    %491 = vmatpush1.bf16.msra.mxu0 0
    %492 = vmatprep.subr.bf16.mxu0 0
    %493 = vmatpush1.bf16.msra.mxu0 0
    %494 = vmatprep.subr.bf16.mxu0 0
    %495 = vmatpush1.bf16.msra.mxu0 0
    %496 = vmatprep.subr.bf16.mxu0 0
    %497 = vmatpush1.bf16.msra.mxu0 0
    %498 = vmatprep.subr.bf16.mxu0 0
    %499 = vmatpush1.bf16.msra.mxu0 0
    %500 = vmatprep.subr.bf16.mxu0 0
    %501 = vmatpush1.bf16.msra.mxu0 0
    %502 = vmatprep.subr.bf16.mxu0 0
    %503 = vmatpush1.bf16.msra.mxu0 0
    %504 = vmatprep.subr.bf16.mxu0 0
    %505 = vmatpush1.bf16.msra.mxu0 0
    %506 = vmatprep.subr.bf16.mxu0 0
    %507 = vmatpush1.bf16.msra.mxu0 0
    %508 = vmatprep.mubr.bf16.mxu0 0
    %509 = vmatmul.mubr.bf16.gmra.mrb[0].mxu0 %v474
    %v510 = vpop.f32.mrb[0].mxu0
    %v511 = vadd.f32 %v467, %v510
    %v512 = vpop.f32.mrb[0].mxu0
    %v513 = vpop.f32.mrb[0].mxu0
    %v514 = vadd.f32 %v470, %v513
    %v515 = vpop.f32.mrb[0].mxu0
    %516 = vdwg.mxu0
    %v517 = vld [vmem:[%s6] sm:$0x1]
    %v519 = vlaneseq
    %v520 = vshrl.u32 %v519, 7
    %v521 = vsub.s32 0, %v520
    %v522 = vrot.slane %v517, %v521
    %v524 = vadd.f32 %v511, %v522
    %v525 = vadd.f32 %v514, %v522
    %526 = vst [vmem:[#allocation12] sm:$0xff] %v524
    %527 = vst [vmem:[#allocation12 + $0x8] sm:$0xff] %v525
    // Predicated region
    $region50: #{tpu_custom_call.1} parent=1 // pred_check
      _
    $region51: #{tpu_custom_call.1} parent=1 // pred_check_branch
      %529 = sbr.rel (0) target = $region53
    $region52: #{tpu_custom_call.1} parent=1 // pred_region
      %s531 = ssub.s32 256, 256
      %532 = vsyncadd [#allocation4], %s531
      %s533 = sshll.u32 [#allocation12], 4
      %s534 = int_to_ptr.vmem [resolvable:$true] %s533
      %539 = dma.vmem_to_hbm [thread:$0]  %s534, 256, %s7, [#allocation4], 128, 128, 8
    $region53: #{tpu_custom_call.1} parent=1 // pred_fallthru
      _
    // Predicated region
    $region54: #{tpu_custom_call.1} parent=1 // pred_check
      _
    $region55: #{tpu_custom_call.1} parent=1 // pred_check_branch
      %541 = sbr.rel (0) target = $region57
    $region56: #{tpu_custom_call.1} parent=1 // pred_region
      %542 = dma.done [#allocation4], 256
    $region57: #{tpu_custom_call.1} parent=1 // pred_fallthru
      _
    %543 = vsyncpa [#allocation3], 1
    %544 = vsyncpa [#allocation7], 1
    %545 = vsyncpa [#allocation4], 1
    %546 = vsyncpa [#allocation5], 1
    %547 = vsyncpa [#allocation11], 1

</llo_original>
